<compile_context>
chip_gen: v7x
topology: tpu7x:2x2x1
jax: 0.10.0
libtpu: 0.0.40
codegen_flags: <defaults>
</compile_context>

<pallas_src>
import jax
import jax.numpy as jnp
from jax.experimental import pallas as pl
from jax.experimental.pallas import tpu as pltpu

LANE = 128


def _round_up(v, m):
    return ((v + m - 1) // m) * m


def _nbytes(a):
    return int(a.size) * jnp.dtype(a.dtype).itemsize


def _vmem_limit(resident_bytes):
    # At least the default scoped limit, at most v7x physical VMEM.
    return int(min(max(2 * resident_bytes, 16 * 1024 * 1024), 64 * 1024 * 1024))


def _resident_spec(shape, index_map):
    """BlockSpec for a block that is fetched exactly once (constant index_map).

    Single-buffered (pipeline_mode=Buffered(1)) to halve its VMEM footprint;
    falls back to a plain BlockSpec if the kwarg is unavailable.
    """
    try:
        return pl.BlockSpec(shape, index_map, pipeline_mode=pl.Buffered(1))
    except (AttributeError, TypeError):
        return pl.BlockSpec(shape, index_map)


# ----------------------------------------------------------------------------
# Small-model path: single grid step, layer loop statically unrolled.
#   a_ref  [Np,Np] bf16     x_ref [Np,Dp] bf16
#   w*_ref [L,Dp,Dp] bf16   b*_ref [L,1,Dp] f32
#   o_ref  [Np,Dp] f32
# ----------------------------------------------------------------------------
def _gin_unrolled_kernel(a_ref, x_ref, w1_ref, b1_ref, w2_ref, b2_ref, o_ref):
    num_layers = w1_ref.shape[0]
    a = a_ref[...]            # load once, stays in vregs/VMEM
    h = x_ref[...]            # bf16 carry
    for l in range(num_layers):                      # static Python unroll
        # Sum aggregation + (1+eps)*self in one MXU matmul (A' = A + (1+eps)I).
        z = jnp.dot(a, h, preferred_element_type=jnp.float32)
        # MLP linear 1 (in-MLP BN folded into W1'/b1') + ReLU.
        h1 = jnp.dot(z.astype(jnp.bfloat16), w1_ref[l],
                     preferred_element_type=jnp.float32) + b1_ref[l]
        h1 = jnp.maximum(h1, 0.0)
        # MLP linear 2 (ApplyNodeFunc BN folded into W2'/b2' on non-final layers).
        h2 = jnp.dot(h1.astype(jnp.bfloat16), w2_ref[l],
                     preferred_element_type=jnp.float32) + b2_ref[l]
        if l < num_layers - 1:
            h = jnp.maximum(h2, 0.0).astype(jnp.bfloat16)   # ApplyNodeFunc ReLU
        else:
            o_ref[...] = h2


def gin_forward_pallas_unrolled(adj_p, x_pad, w1_all, b1_all, w2_all, b2_all):
    n_pad, d_pad = x_pad.shape
    num_layers = w1_all.shape[0]
    resident = (_nbytes(adj_p) + _nbytes(x_pad) + _nbytes(w1_all)
                + _nbytes(b1_all) + _nbytes(w2_all) + _nbytes(b2_all)
                + n_pad * d_pad * 4)
    return pl.pallas_call(
        _gin_unrolled_kernel,
        out_shape=jax.ShapeDtypeStruct((n_pad, d_pad), jnp.float32),
        grid_spec=pltpu.PrefetchScalarGridSpec(
            num_scalar_prefetch=0,
            grid=(1,),
            in_specs=[
                _resident_spec((n_pad, n_pad), lambda i: (0, 0)),
                _resident_spec((n_pad, d_pad), lambda i: (0, 0)),
                _resident_spec((num_layers, d_pad, d_pad), lambda i: (0, 0, 0)),
                _resident_spec((num_layers, 1, d_pad), lambda i: (0, 0, 0)),
                _resident_spec((num_layers, d_pad, d_pad), lambda i: (0, 0, 0)),
                _resident_spec((num_layers, 1, d_pad), lambda i: (0, 0, 0)),
            ],
            out_specs=_resident_spec((n_pad, d_pad), lambda i: (0, 0)),
        ),
        compiler_params=pltpu.CompilerParams(
            dimension_semantics=("arbitrary",),
            vmem_limit_bytes=_vmem_limit(resident)),
    )(adj_p, x_pad, w1_all, b1_all, w2_all, b2_all)


# ----------------------------------------------------------------------------
# Large-model path: grid over layers; A'/x/out resident, weights streamed,
# bf16 carry in VMEM scratch.
# ----------------------------------------------------------------------------
def _gin_layer_grid_kernel(a_ref, x_ref, w1_ref, b1_ref, w2_ref, b2_ref,
                           o_ref, h_ref):
    l = pl.program_id(0)
    nl = pl.num_programs(0)

    @pl.when(l == 0)
    def _init():
        h_ref[...] = x_ref[...]

    h = h_ref[...]
    z = jnp.dot(a_ref[...], h, preferred_element_type=jnp.float32)
    h1 = jnp.maximum(
        jnp.dot(z.astype(jnp.bfloat16), w1_ref[...],
                preferred_element_type=jnp.float32) + b1_ref[...], 0.0)
    h2 = jnp.dot(h1.astype(jnp.bfloat16), w2_ref[...],
                 preferred_element_type=jnp.float32) + b2_ref[...]

    @pl.when(l < nl - 1)
    def _intermediate():
        h_ref[...] = jnp.maximum(h2, 0.0).astype(jnp.bfloat16)

    @pl.when(l == nl - 1)
    def _final():
        o_ref[...] = h2


def gin_forward_pallas_grid(adj_p, x_pad, w1_all, b1_all, w2_all, b2_all):
    n_pad, d_pad = x_pad.shape
    num_layers = w1_all.shape[0]
    per_layer_w = (_nbytes(w1_all) + _nbytes(b1_all) + _nbytes(w2_all)
                   + _nbytes(b2_all)) // num_layers
    resident = (_nbytes(adj_p) + _nbytes(x_pad)       # A', x (single-buffered)
                + n_pad * d_pad * 2                   # bf16 carry scratch
                + n_pad * d_pad * 4                   # f32 output block
                + 2 * per_layer_w)                    # double-buffered weights
    return pl.pallas_call(
        _gin_layer_grid_kernel,
        out_shape=jax.ShapeDtypeStruct((n_pad, d_pad), jnp.float32),
        grid_spec=pltpu.PrefetchScalarGridSpec(
            num_scalar_prefetch=0,
            grid=(num_layers,),
            in_specs=[
                _resident_spec((n_pad, n_pad), lambda l: (0, 0)),      # A'
                _resident_spec((n_pad, d_pad), lambda l: (0, 0)),      # x0
                pl.BlockSpec((None, d_pad, d_pad), lambda l: (l, 0, 0)),  # W1'
                pl.BlockSpec((None, 1, d_pad), lambda l: (l, 0, 0)),      # b1'
                pl.BlockSpec((None, d_pad, d_pad), lambda l: (l, 0, 0)),  # W2'
                pl.BlockSpec((None, 1, d_pad), lambda l: (l, 0, 0)),      # b2'
            ],
            out_specs=_resident_spec((n_pad, d_pad), lambda l: (0, 0)),
            scratch_shapes=[pltpu.VMEM((n_pad, d_pad), jnp.bfloat16)],
        ),
        compiler_params=pltpu.CompilerParams(
            dimension_semantics=("arbitrary",),
            vmem_limit_bytes=_vmem_limit(resident)),
    )(adj_p, x_pad, w1_all, b1_all, w2_all, b2_all)


def gin_forward_pallas(adj_p, x_pad, w1_all, b1_all, w2_all, b2_all,
                       unroll_vmem_budget=24 * 1024 * 1024):
    total = (_nbytes(adj_p) + _nbytes(x_pad) + _nbytes(w1_all)
             + _nbytes(b1_all) + _nbytes(w2_all) + _nbytes(b2_all)
             + x_pad.shape[0] * x_pad.shape[1] * 4)
    if total <= unroll_vmem_budget:
        return gin_forward_pallas_unrolled(adj_p, x_pad, w1_all, b1_all,
                                           w2_all, b2_all)
    return gin_forward_pallas_grid(adj_p, x_pad, w1_all, b1_all, w2_all, b2_all)


# ----------------------------------------------------------------------------
# Wrapper-side preparation: padding, eps/BN folding, dense adjacency.
# ----------------------------------------------------------------------------
def _pad2(a, rows, cols):
    out = jnp.zeros((rows, cols), a.dtype)
    return out.at[:a.shape[0], :a.shape[1]].set(a)


def prepare_layer_tensors(layer_params, d_pad):
    """Fold BatchNorm(eval) into the linears, zero-pad to d_pad, stack per layer."""
    num_layers = len(layer_params)
    w1s, b1s, w2s, b2s = [], [], [], []
    for li, p in enumerate(layer_params):
        is_intermediate = li < num_layers - 1
        # Fold in-MLP BN into Linear1.
        w1 = p["w1"] * p["s1"]                 # [din, dh] * [1, dh]
        b1 = p["b1"] * p["s1"] + p["t1"]       # [1, dh]
        if is_intermediate:
            # Fold ApplyNodeFunc's BN into Linear2 (its ReLU stays in-kernel).
            w2 = p["w2"] * p["s2"]
            b2 = p["b2"] * p["s2"] + p["t2"]
        else:
            w2, b2 = p["w2"], p["b2"]
        w1s.append(_pad2(w1, d_pad, d_pad).astype(jnp.bfloat16))
        b1s.append(_pad2(b1, 1, d_pad))
        w2s.append(_pad2(w2, d_pad, d_pad).astype(jnp.bfloat16))
        b2s.append(_pad2(b2, 1, d_pad))
    return (jnp.stack(w1s), jnp.stack(b1s), jnp.stack(w2s), jnp.stack(b2s))


def prepare_inputs(x, edge_index, layer_params):
    n = x.shape[0]
    n_pad = _round_up(max(n, 8), LANE)          # lane-dense A', full MXU K
    d_max = max(max(p["w1"].shape[0], p["w1"].shape[1], p["w2"].shape[1])
                for p in layer_params)
    d_pad = _round_up(max(d_max, x.shape[1]), LANE)

    # Folding (1+eps) into A' requires identical eps across layers
    # (learn_eps=False, init_eps=0.0 in the module).
    eps_vals = [float(p["eps"][0]) for p in layer_params]
    assert all(v == eps_vals[0] for v in eps_vals), \
        "per-layer eps folding requires identical eps across layers"

    # Dense adjacency with multiplicity: A[i, j] = #edges (j -> i).
    src, dst = edge_index[0], edge_index[1]
    adj = jnp.zeros((n, n), jnp.float32).at[dst, src].add(1.0)
    assert float(adj.max()) <= 256.0, \
        "bf16 A' is exact only for edge multiplicities <= 256"
    adj_p = adj + (1.0 + eps_vals[0]) * jnp.eye(n, dtype=jnp.float32)
    adj_pad = (jnp.zeros((n_pad, n_pad), jnp.float32)
               .at[:n, :n].set(adj_p).astype(jnp.bfloat16))

    x_pad = (jnp.zeros((n_pad, d_pad), jnp.float32)
             .at[:n, :x.shape[1]].set(x).astype(jnp.bfloat16))

    w1_all, b1_all, w2_all, b2_all = prepare_layer_tensors(layer_params, d_pad)
    return adj_pad, x_pad, w1_all, b1_all, w2_all, b2_all


def gin_forward(x, edge_index, layer_params, out_dim):
    prepared = prepare_inputs(x, edge_index, layer_params)
    out_pad = gin_forward_pallas(*prepared)
    return out_pad[:x.shape[0], :out_dim], out_pad, prepared


# ----------------------------------------------------------------------------
# Parameter construction (deterministic, mimics the module's __init__ shapes)
# ----------------------------------------------------------------------------
def _fold_bn(gamma, beta, rmean, rvar, eps=1e-5):
    scale = gamma / jnp.sqrt(rvar + eps)
    shift = beta - rmean * scale
    return scale[None, :], shift[None, :]


def make_layer_params(key, d_in, d_hid, d_out):
    ks = jax.random.split(key, 10)
    w1 = jax.random.normal(ks[0], (d_in, d_hid), jnp.float32) * (1.0 / jnp.sqrt(d_in))
    b1 = jax.random.normal(ks[1], (1, d_hid), jnp.float32) * 0.02
    w2 = jax.random.normal(ks[2], (d_hid, d_out), jnp.float32) * (1.0 / jnp.sqrt(d_hid))
    b2 = jax.random.normal(ks[3], (1, d_out), jnp.float32) * 0.02
    # BatchNorm (eval-mode) parameters, deterministic but non-trivial.
    g1 = 1.0 + 0.1 * jax.random.normal(ks[4], (d_hid,), jnp.float32)
    be1 = 0.1 * jax.random.normal(ks[5], (d_hid,), jnp.float32)
    rm1 = 0.1 * jax.random.normal(ks[6], (d_hid,), jnp.float32)
    rv1 = 1.0 + 0.1 * jax.random.uniform(ks[7], (d_hid,), jnp.float32)
    s1, t1 = _fold_bn(g1, be1, rm1, rv1)
    g2 = 1.0 + 0.1 * jax.random.normal(ks[8], (d_out,), jnp.float32)
    be2 = 0.1 * jax.random.normal(ks[9], (d_out,), jnp.float32)
    s2, t2 = _fold_bn(g2, be2, jnp.zeros((d_out,)), jnp.ones((d_out,)))
    eps = jnp.zeros((1,), jnp.float32)  # init_eps=0.0, learn_eps=False
    return dict(eps=eps, w1=w1, b1=b1, s1=s1, t1=t1, w2=w2, b2=b2, s2=s2, t2=t2)


# ----------------------------------------------------------------------------
# References
# ----------------------------------------------------------------------------
def gin_reference_prepared(adj_p, x_pad, w1_all, b1_all, w2_all, b2_all):
    """Pure-JAX reference mirroring the kernel's folded/padded bf16 numerics."""
    num_layers = w1_all.shape[0]
    h = x_pad
    for l in range(num_layers):
        z = jnp.dot(adj_p, h, preferred_element_type=jnp.float32)
        h1 = jnp.maximum(
            jnp.dot(z.astype(jnp.bfloat16), w1_all[l],
                    preferred_element_type=jnp.float32) + b1_all[l], 0.0)
        h2 = jnp.dot(h1.astype(jnp.bfloat16), w2_all[l],
                     preferred_element_type=jnp.float32) + b2_all[l]
        if l < num_layers - 1:
            h = jnp.maximum(h2, 0.0).astype(jnp.bfloat16)
        else:
            h = h2
    return h


def gin_reference_f32(x, edge_index, layer_params):
    """Original-semantics (full f32, unpadded) reference."""
    n = x.shape[0]
    src, dst = edge_index[0], edge_index[1]
    adj = jnp.zeros((n, n), jnp.float32).at[dst, src].add(1.0)
    h = x
    num_layers = len(layer_params)
    for li, p in enumerate(layer_params):
        z = (1.0 + p["eps"][0]) * h + adj @ h
        h1 = jnp.maximum((z @ p["w1"] + p["b1"]) * p["s1"] + p["t1"], 0.0)
        h2 = h1 @ p["w2"] + p["b2"]
        if li < num_layers - 1:
            h2 = jnp.maximum(h2 * p["s2"] + p["t2"], 0.0)
        h = h2
    return h


if __name__ == "__main__":
    # Small deterministic example: N=64 nodes, in_dim=16, hidden=32, out=16,
    # num_layers=2, dropout=0.5 (eval -> identity), residual=False.
    N, IN_DIM, HIDDEN, OUT_DIM, NUM_LAYERS, E = 64, 16, 32, 16, 2, 256

    key = jax.random.PRNGKey(0)
    kx, ke, kp = jax.random.split(key, 3)
    x = jax.random.normal(kx, (N, IN_DIM), jnp.float32)
    edge_index = jax.random.randint(ke, (2, E), 0, N, dtype=jnp.int32)

    dims = [(IN_DIM, HIDDEN, HIDDEN)] + \
           [(HIDDEN, HIDDEN, HIDDEN)] * (NUM_LAYERS - 2) + \
           [(HIDDEN, HIDDEN, OUT_DIM)]
    layer_keys = jax.random.split(kp, NUM_LAYERS)
    layer_params = [make_layer_params(layer_keys[i], *dims[i])
                    for i in range(NUM_LAYERS)]

    # Primary (unrolled, single grid step) path.
    out, out_pad, prepared = gin_forward(x, edge_index, layer_params, OUT_DIM)
    out = jax.block_until_ready(out)
    assert out.shape == (N, OUT_DIM)

    # Padded feature lanes of real rows must stay exactly zero.
    assert bool(jnp.allclose(out_pad[:N, OUT_DIM:], 0.0))

    # Tight check vs a reference that matches the kernel's bf16-operand math.
    ref_matched = gin_reference_prepared(*prepared)[:N, :OUT_DIM]
    assert bool(jnp.allclose(out, ref_matched, atol=1e-3, rtol=1e-3)), \
        "mismatch vs bf16-matched reference"

    # Large-model (layer-grid) path must agree with the unrolled path.
    out_pad_grid = jax.block_until_ready(gin_forward_pallas_grid(*prepared))
    assert bool(jnp.allclose(out_pad[:N], out_pad_grid[:N], atol=1e-3, rtol=1e-3)), \
        "grid path disagrees with unrolled path"

    # Loose check vs the original full-f32 module semantics (bf16 matmul
    # operands introduce ~0.5% error; assert on normalized Frobenius error).
    ref_f32 = gin_reference_f32(x, edge_index, layer_params)
    rel_err = float(jnp.linalg.norm(out - ref_f32)
                    / (jnp.linalg.norm(ref_f32) + 1e-8))
    assert rel_err < 3e-2, f"relative error vs f32 reference too large: {rel_err}"

    print("KERNEL_OK")
</pallas_src>

<mosaic_0001>
module attributes {stable_mosaic.version = 11 : i64} {
  func.func @_gin_unrolled_kernel(%arg0: i32, %arg1: memref<128x128xbf16, #tpu.memory_space<vmem>>, %arg2: memref<128x128xbf16, #tpu.memory_space<vmem>>, %arg3: memref<2x128x128xbf16, #tpu.memory_space<vmem>>, %arg4: memref<2x1x128xf32, #tpu.memory_space<vmem>>, %arg5: memref<2x128x128xbf16, #tpu.memory_space<vmem>>, %arg6: memref<2x1x128xf32, #tpu.memory_space<vmem>>, %arg7: memref<128x128xf32, #tpu.memory_space<vmem>>) attributes {dimension_semantics = [#tpu.dimension_semantics<arbitrary>], iteration_bounds = array<i64: 1>, scalar_prefetch = 0 : i64, scratch_operands = 0 : i64, tpu.core_type = #tpu.core_type<tc>, window_params = [{pipeline_mode = #tpu.pipeline_mode<synchronous>, transform_indices = @transform_0, window_bounds = array<i64: 128, 128>}, {pipeline_mode = #tpu.pipeline_mode<synchronous>, transform_indices = @transform_1, window_bounds = array<i64: 128, 128>}, {pipeline_mode = #tpu.pipeline_mode<synchronous>, transform_indices = @transform_2, window_bounds = array<i64: 2, 128, 128>}, {pipeline_mode = #tpu.pipeline_mode<synchronous>, transform_indices = @transform_3, window_bounds = array<i64: 2, 1, 128>}, {pipeline_mode = #tpu.pipeline_mode<synchronous>, transform_indices = @transform_4, window_bounds = array<i64: 2, 128, 128>}, {pipeline_mode = #tpu.pipeline_mode<synchronous>, transform_indices = @transform_5, window_bounds = array<i64: 2, 1, 128>}, {pipeline_mode = #tpu.pipeline_mode<synchronous>, transform_indices = @transform_6, window_bounds = array<i64: 128, 128>}]} {
    %c0 = arith.constant 0 : index
    %c0_0 = arith.constant 0 : index
    %0 = vector.load %arg1[%c0, %c0_0] : memref<128x128xbf16, #tpu.memory_space<vmem>>, vector<128x128xbf16>
    %c0_1 = arith.constant 0 : index
    %c0_2 = arith.constant 0 : index
    %1 = vector.load %arg2[%c0_1, %c0_2] : memref<128x128xbf16, #tpu.memory_space<vmem>>, vector<128x128xbf16>
    %cst = arith.constant dense<0.000000e+00> : vector<128x128xf32>
    %2 = tpu.matmul %0, %1, %cst {dimension_numbers = #tpu.dot_dimension_numbers<[1], [0], [0], [1], [0, 0, 1, 1], [], []>} : vector<128x128xbf16>, vector<128x128xbf16>, vector<128x128xf32> -> vector<128x128xf32>
    %3 = arith.truncf %2 : vector<128x128xf32> to vector<128x128xbf16>
    %c0_3 = arith.constant 0 : index
    %c0_4 = arith.constant 0 : index
    %c0_5 = arith.constant 0 : index
    %4 = vector.load %arg3[%c0_3, %c0_4, %c0_5] : memref<2x128x128xbf16, #tpu.memory_space<vmem>>, vector<1x128x128xbf16>
    %5 = vector.shape_cast %4 : vector<1x128x128xbf16> to vector<128x128xbf16>
    %cst_6 = arith.constant dense<0.000000e+00> : vector<128x128xf32>
    %6 = tpu.matmul %3, %5, %cst_6 {dimension_numbers = #tpu.dot_dimension_numbers<[1], [0], [0], [1], [0, 0, 1, 1], [], []>} : vector<128x128xbf16>, vector<128x128xbf16>, vector<128x128xf32> -> vector<128x128xf32>
    %c0_7 = arith.constant 0 : index
    %c0_8 = arith.constant 0 : index
    %c0_9 = arith.constant 0 : index
    %7 = vector.load %arg4[%c0_7, %c0_8, %c0_9] : memref<2x1x128xf32, #tpu.memory_space<vmem>>, vector<1x1x128xf32>
    %8 = vector.shape_cast %7 : vector<1x1x128xf32> to vector<1x128xf32>
    %9 = vector.broadcast %8 : vector<1x128xf32> to vector<128x128xf32>
    %10 = arith.addf %6, %9 : vector<128x128xf32>
    %cst_10 = arith.constant 0.000000e+00 : f32
    %11 = vector.broadcast %cst_10 : f32 to vector<128x128xf32>
    %12 = arith.maximumf %10, %11 : vector<128x128xf32>
    %13 = arith.truncf %12 : vector<128x128xf32> to vector<128x128xbf16>
    %c0_11 = arith.constant 0 : index
    %c0_12 = arith.constant 0 : index
    %c0_13 = arith.constant 0 : index
    %14 = vector.load %arg5[%c0_11, %c0_12, %c0_13] : memref<2x128x128xbf16, #tpu.memory_space<vmem>>, vector<1x128x128xbf16>
    %15 = vector.shape_cast %14 : vector<1x128x128xbf16> to vector<128x128xbf16>
    %cst_14 = arith.constant dense<0.000000e+00> : vector<128x128xf32>
    %16 = tpu.matmul %13, %15, %cst_14 {dimension_numbers = #tpu.dot_dimension_numbers<[1], [0], [0], [1], [0, 0, 1, 1], [], []>} : vector<128x128xbf16>, vector<128x128xbf16>, vector<128x128xf32> -> vector<128x128xf32>
    %c0_15 = arith.constant 0 : index
    %c0_16 = arith.constant 0 : index
    %c0_17 = arith.constant 0 : index
    %17 = vector.load %arg6[%c0_15, %c0_16, %c0_17] : memref<2x1x128xf32, #tpu.memory_space<vmem>>, vector<1x1x128xf32>
    %18 = vector.shape_cast %17 : vector<1x1x128xf32> to vector<1x128xf32>
    %19 = vector.broadcast %18 : vector<1x128xf32> to vector<128x128xf32>
    %20 = arith.addf %16, %19 : vector<128x128xf32>
    %cst_18 = arith.constant 0.000000e+00 : f32
    %21 = vector.broadcast %cst_18 : f32 to vector<128x128xf32>
    %22 = arith.maximumf %20, %21 : vector<128x128xf32>
    %23 = arith.truncf %22 : vector<128x128xf32> to vector<128x128xbf16>
    %cst_19 = arith.constant dense<0.000000e+00> : vector<128x128xf32>
    %24 = tpu.matmul %0, %23, %cst_19 {dimension_numbers = #tpu.dot_dimension_numbers<[1], [0], [0], [1], [0, 0, 1, 1], [], []>} : vector<128x128xbf16>, vector<128x128xbf16>, vector<128x128xf32> -> vector<128x128xf32>
    %25 = arith.truncf %24 : vector<128x128xf32> to vector<128x128xbf16>
    %c1 = arith.constant 1 : index
    %c0_20 = arith.constant 0 : index
    %c0_21 = arith.constant 0 : index
    %26 = vector.load %arg3[%c1, %c0_20, %c0_21] : memref<2x128x128xbf16, #tpu.memory_space<vmem>>, vector<1x128x128xbf16>
    %27 = vector.shape_cast %26 : vector<1x128x128xbf16> to vector<128x128xbf16>
    %cst_22 = arith.constant dense<0.000000e+00> : vector<128x128xf32>
    %28 = tpu.matmul %25, %27, %cst_22 {dimension_numbers = #tpu.dot_dimension_numbers<[1], [0], [0], [1], [0, 0, 1, 1], [], []>} : vector<128x128xbf16>, vector<128x128xbf16>, vector<128x128xf32> -> vector<128x128xf32>
    %c1_23 = arith.constant 1 : index
    %c0_24 = arith.constant 0 : index
    %c0_25 = arith.constant 0 : index
    %29 = vector.load %arg4[%c1_23, %c0_24, %c0_25] : memref<2x1x128xf32, #tpu.memory_space<vmem>>, vector<1x1x128xf32>
    %30 = vector.shape_cast %29 : vector<1x1x128xf32> to vector<1x128xf32>
    %31 = vector.broadcast %30 : vector<1x128xf32> to vector<128x128xf32>
    %32 = arith.addf %28, %31 : vector<128x128xf32>
    %cst_26 = arith.constant 0.000000e+00 : f32
    %33 = vector.broadcast %cst_26 : f32 to vector<128x128xf32>
    %34 = arith.maximumf %32, %33 : vector<128x128xf32>
    %35 = arith.truncf %34 : vector<128x128xf32> to vector<128x128xbf16>
    %c1_27 = arith.constant 1 : index
    %c0_28 = arith.constant 0 : index
    %c0_29 = arith.constant 0 : index
    %36 = vector.load %arg5[%c1_27, %c0_28, %c0_29] : memref<2x128x128xbf16, #tpu.memory_space<vmem>>, vector<1x128x128xbf16>
    %37 = vector.shape_cast %36 : vector<1x128x128xbf16> to vector<128x128xbf16>
    %cst_30 = arith.constant dense<0.000000e+00> : vector<128x128xf32>
    %38 = tpu.matmul %35, %37, %cst_30 {dimension_numbers = #tpu.dot_dimension_numbers<[1], [0], [0], [1], [0, 0, 1, 1], [], []>} : vector<128x128xbf16>, vector<128x128xbf16>, vector<128x128xf32> -> vector<128x128xf32>
    %c1_31 = arith.constant 1 : index
    %c0_32 = arith.constant 0 : index
    %c0_33 = arith.constant 0 : index
    %39 = vector.load %arg6[%c1_31, %c0_32, %c0_33] : memref<2x1x128xf32, #tpu.memory_space<vmem>>, vector<1x1x128xf32>
    %40 = vector.shape_cast %39 : vector<1x1x128xf32> to vector<1x128xf32>
    %41 = vector.broadcast %40 : vector<1x128xf32> to vector<128x128xf32>
    %42 = arith.addf %38, %41 : vector<128x128xf32>
    %c0_34 = arith.constant 0 : index
    %c0_35 = arith.constant 0 : index
    %43 = vector.load %arg7[%c0_34, %c0_35] : memref<128x128xf32, #tpu.memory_space<vmem>>, vector<128x128xf32>
    tpu.vector_store %arg7[%c0_34, %c0_35], %42 {strides = array<i32>} : memref<128x128xf32, #tpu.memory_space<vmem>>, vector<128x128xf32>,
    return
  }
  func.func @transform_0(%arg0: i32) -> (i32, i32) {
    %c0_i32 = arith.constant 0 : i32
    %c0_i32_0 = arith.constant 0 : i32
    %c0_i32_1 = arith.constant 0 : i32
    return %c0_i32, %c0_i32_0 : i32, i32
  }
  func.func @transform_1(%arg0: i32) -> (i32, i32) {
    %c0_i32 = arith.constant 0 : i32
    %c0_i32_0 = arith.constant 0 : i32
    %c0_i32_1 = arith.constant 0 : i32
    return %c0_i32, %c0_i32_0 : i32, i32
  }
  func.func @transform_2(%arg0: i32) -> (i32, i32, i32) {
    %c0_i32 = arith.constant 0 : i32
    %c0_i32_0 = arith.constant 0 : i32
    %c0_i32_1 = arith.constant 0 : i32
    %c0_i32_2 = arith.constant 0 : i32
    return %c0_i32, %c0_i32_0, %c0_i32_1 : i32, i32, i32
  }
  func.func @transform_3(%arg0: i32) -> (i32, i32, i32) {
    %c0_i32 = arith.constant 0 : i32
    %c0_i32_0 = arith.constant 0 : i32
    %c0_i32_1 = arith.constant 0 : i32
    %c0_i32_2 = arith.constant 0 : i32
    return %c0_i32, %c0_i32_0, %c0_i32_1 : i32, i32, i32
  }
  func.func @transform_4(%arg0: i32) -> (i32, i32, i32) {
    %c0_i32 = arith.constant 0 : i32
    %c0_i32_0 = arith.constant 0 : i32
    %c0_i32_1 = arith.constant 0 : i32
    %c0_i32_2 = arith.constant 0 : i32
    return %c0_i32, %c0_i32_0, %c0_i32_1 : i32, i32, i32
  }
  func.func @transform_5(%arg0: i32) -> (i32, i32, i32) {
    %c0_i32 = arith.constant 0 : i32
    %c0_i32_0 = arith.constant 0 : i32
    %c0_i32_1 = arith.constant 0 : i32
    %c0_i32_2 = arith.constant 0 : i32
    return %c0_i32, %c0_i32_0, %c0_i32_1 : i32, i32, i32
  }
  func.func @transform_6(%arg0: i32) -> (i32, i32) {
    %c0_i32 = arith.constant 0 : i32
    %c0_i32_0 = arith.constant 0 : i32
    %c0_i32_1 = arith.constant 0 : i32
    return %c0_i32, %c0_i32_0 : i32, i32
  }
}

</mosaic_0001>

<llo_original>
// kernel: tpu_custom_call.1
$region0: #{tpu_custom_call.1}
  #allocation0 [shape = 'u32[]', space=smem, size = 0x4, offset = 0x4, fixed_abs, tag = 'smem constant byte address 0x4 - core index']
  #allocation1 [shape = 'u32[144,128]{1,0:T(1,128)}', space=vmem, size = 0x12000, scoped, tag = 'internal scratch']
  %s0 = inlined_call_operand.hbm [shape: bf16[128,128], index: 0, kind: input, shape index: {}]
  %s1 = inlined_call_operand.hbm [shape: bf16[128,128], index: 1, kind: input, shape index: {}]
  %s2 = inlined_call_operand.hbm [shape: bf16[2,128,128], index: 2, kind: input, shape index: {}]
  %s3 = inlined_call_operand.vmem [shape: f32[2,1,128], index: 3, kind: input, shape index: {}]
  %s4 = inlined_call_operand.hbm [shape: bf16[2,128,128], index: 4, kind: input, shape index: {}]
  %s5 = inlined_call_operand.vmem [shape: f32[2,1,128], index: 5, kind: input, shape index: {}]
  %s6 = inlined_call_operand.hbm [shape: f32[128,128], index: 6, kind: output, shape index: {}]
  %s7 = sld [smem:[#allocation0]]
  $region50: #{tpu_custom_call.1} parent=0
    _
  %s9 = ssub.s32 1, %s7
  %s10 = scalar_select 0, %s9, %s7
  $region1: #{tpu_custom_call.1} parent=0
    #allocation2 [shape = 'u8[32768]{0}', space=vmem, size = 0x8000, scoped, tag = 'input window, operand 0, single buffered']
    #allocation3 [shape = 's32[1]{0}', space=sflag, size = 0x4, scoped, tag = 'scoped memory for tpu_custom_call.1']
    #allocation4 [shape = 's32[1]{0}', space=sflag, size = 0x4, scoped, tag = 'scoped memory for tpu_custom_call.1']
    #allocation5 [shape = 'u8[32768]{0}', space=vmem, size = 0x8000, scoped, tag = 'input window, operand 1, single buffered']
    #allocation6 [shape = 's32[1]{0}', space=sflag, size = 0x4, scoped, tag = 'scoped memory for tpu_custom_call.1']
    #allocation7 [shape = 'u8[65536]{0}', space=vmem, size = 0x10000, scoped, tag = 'input window, operand 2, single buffered']
    #allocation8 [shape = 'u8[65536]{0}', space=vmem, size = 0x10000, scoped, tag = 'input window, operand 4, single buffered']
    #allocation9 [shape = 's32[1]{0}', space=sflag, size = 0x4, scoped, tag = 'scoped memory for tpu_custom_call.1']
    #allocation10 [shape = 'u8[65536]{0}', space=vmem, size = 0x10000, scoped, tag = 'output window, operand 0, single buffered']
    %11 = vsyncpa [#allocation3], 0
    %12 = vsyncpa [#allocation6], 0
    %13 = vsyncpa [#allocation9], 0
    %14 = vsyncpa [#allocation4], 0
    // Predicated region
    $region2: #{tpu_custom_call.1} parent=1 // pred_check
      _
    $region3: #{tpu_custom_call.1} parent=1 // pred_check_branch
      %16 = sbr.rel (0) target = $region5
    $region4: #{tpu_custom_call.1} parent=1 // pred_region
      %s18 = ssub.s32 1024, 1024
      %19 = vsyncadd [#allocation3], %s18
      %s20 = sshll.u32 [#allocation2], 4
      %s21 = int_to_ptr.vmem [resolvable:$true] %s20
      %26 = dma.hbm_to_vmem [thread:$0]  %s0, 1024, %s21, [#allocation3], 64, 64, 4
    $region5: #{tpu_custom_call.1} parent=1 // pred_fallthru
      _
    // Predicated region
    $region6: #{tpu_custom_call.1} parent=1 // pred_check
      _
    $region7: #{tpu_custom_call.1} parent=1 // pred_check_branch
      %28 = sbr.rel (0) target = $region9
    $region8: #{tpu_custom_call.1} parent=1 // pred_region
      %s30 = ssub.s32 1024, 1024
      %31 = vsyncadd [#allocation6], %s30
      %s32 = sshll.u32 [#allocation5], 4
      %s33 = int_to_ptr.vmem [resolvable:$true] %s32
      %38 = dma.hbm_to_vmem [thread:$0]  %s1, 1024, %s33, [#allocation6], 64, 64, 4
    $region9: #{tpu_custom_call.1} parent=1 // pred_fallthru
      _
    // Predicated region
    $region10: #{tpu_custom_call.1} parent=1 // pred_check
      _
    $region11: #{tpu_custom_call.1} parent=1 // pred_check_branch
      %40 = sbr.rel (0) target = $region13
    $region12: #{tpu_custom_call.1} parent=1 // pred_region
      %s42 = ssub.s32 2048, 2048
      %43 = vsyncadd [#allocation6], %s42
      %s44 = sshll.u32 [#allocation7], 4
      %s45 = int_to_ptr.vmem [resolvable:$true] %s44
      %50 = dma.hbm_to_vmem [thread:$0]  %s2, 2048, %s45, [#allocation6], 64, 64, 4
    $region13: #{tpu_custom_call.1} parent=1 // pred_fallthru
      _
    // Predicated region
    $region14: #{tpu_custom_call.1} parent=1 // pred_check
      _
    $region15: #{tpu_custom_call.1} parent=1 // pred_check_branch
      %52 = sbr.rel (0) target = $region17
    $region16: #{tpu_custom_call.1} parent=1 // pred_region
      _
    $region17: #{tpu_custom_call.1} parent=1 // pred_fallthru
      _
    // Predicated region
    $region18: #{tpu_custom_call.1} parent=1 // pred_check
      _
    $region19: #{tpu_custom_call.1} parent=1 // pred_check_branch
      %54 = sbr.rel (0) target = $region21
    $region20: #{tpu_custom_call.1} parent=1 // pred_region
      %s56 = ssub.s32 2048, 2048
      %57 = vsyncadd [#allocation9], %s56
      %s58 = sshll.u32 [#allocation8], 4
      %s59 = int_to_ptr.vmem [resolvable:$true] %s58
      %64 = dma.hbm_to_vmem [thread:$0]  %s4, 2048, %s59, [#allocation9], 64, 64, 4
    $region21: #{tpu_custom_call.1} parent=1 // pred_fallthru
      _
    // Predicated region
    $region22: #{tpu_custom_call.1} parent=1 // pred_check
      _
    $region23: #{tpu_custom_call.1} parent=1 // pred_check_branch
      %66 = sbr.rel (0) target = $region25
    $region24: #{tpu_custom_call.1} parent=1 // pred_region
      _
    $region25: #{tpu_custom_call.1} parent=1 // pred_fallthru
      _
    // Predicated region
    $region26: #{tpu_custom_call.1} parent=1 // pred_check
      _
    $region27: #{tpu_custom_call.1} parent=1 // pred_check_branch
      %68 = sbr.rel (0) target = $region29
    $region28: #{tpu_custom_call.1} parent=1 // pred_region
      %69 = dma.done [#allocation3], 1024
    $region29: #{tpu_custom_call.1} parent=1 // pred_fallthru
      _
    // Predicated region
    $region30: #{tpu_custom_call.1} parent=1 // pred_check
      _
    $region31: #{tpu_custom_call.1} parent=1 // pred_check_branch
      %71 = sbr.rel (0) target = $region33
    $region32: #{tpu_custom_call.1} parent=1 // pred_region
      %72 = dma.done [#allocation6], 1024
    $region33: #{tpu_custom_call.1} parent=1 // pred_fallthru
      _
    // Predicated region
    $region34: #{tpu_custom_call.1} parent=1 // pred_check
      _
    $region35: #{tpu_custom_call.1} parent=1 // pred_check_branch
      %74 = sbr.rel (0) target = $region37
    $region36: #{tpu_custom_call.1} parent=1 // pred_region
      %75 = dma.done [#allocation6], 2048
    $region37: #{tpu_custom_call.1} parent=1 // pred_fallthru
      _
    // Predicated region
    $region38: #{tpu_custom_call.1} parent=1 // pred_check
      _
    $region39: #{tpu_custom_call.1} parent=1 // pred_check_branch
      %77 = sbr.rel (0) target = $region41
    $region40: #{tpu_custom_call.1} parent=1 // pred_region
      %78 = dma.done [#allocation9], 2048
    $region41: #{tpu_custom_call.1} parent=1 // pred_fallthru
      _
    %v80 = vld [vmem:[#allocation2] sm:$0xf]
    %v81 = vld [vmem:[#allocation2 + $0x4] sm:$0xf]
    %v82 = vld [vmem:[#allocation2 + $0x8] sm:$0xf]
    %v83 = vld [vmem:[#allocation2 + $0xc] sm:$0xf]
    %v84 = vld [vmem:[#allocation2 + $0x10] sm:$0xf]
    %v85 = vld [vmem:[#allocation2 + $0x14] sm:$0xf]
    %v86 = vld [vmem:[#allocation2 + $0x18] sm:$0xf]
    %v87 = vld [vmem:[#allocation2 + $0x1c] sm:$0xf]
    %v88 = vld [vmem:[#allocation2 + $0x20] sm:$0xf]
    %v89 = vld [vmem:[#allocation2 + $0x24] sm:$0xf]
    %v90 = vld [vmem:[#allocation2 + $0x28] sm:$0xf]
    %v91 = vld [vmem:[#allocation2 + $0x2c] sm:$0xf]
    %v92 = vld [vmem:[#allocation2 + $0x30] sm:$0xf]
    %v93 = vld [vmem:[#allocation2 + $0x34] sm:$0xf]
    %v94 = vld [vmem:[#allocation2 + $0x38] sm:$0xf]
    %v95 = vld [vmem:[#allocation2 + $0x3c] sm:$0xf]
    %v96 = vld [vmem:[#allocation5] sm:$0xf]
    %v97 = vld [vmem:[#allocation5 + $0x4] sm:$0xf]
    %v98 = vld [vmem:[#allocation5 + $0x8] sm:$0xf]
    %v99 = vld [vmem:[#allocation5 + $0xc] sm:$0xf]
    %v100 = vld [vmem:[#allocation5 + $0x10] sm:$0xf]
    %v101 = vld [vmem:[#allocation5 + $0x14] sm:$0xf]
    %v102 = vld [vmem:[#allocation5 + $0x18] sm:$0xf]
    %v103 = vld [vmem:[#allocation5 + $0x1c] sm:$0xf]
    %v104 = vld [vmem:[#allocation5 + $0x20] sm:$0xf]
    %v105 = vld [vmem:[#allocation5 + $0x24] sm:$0xf]
    %v106 = vld [vmem:[#allocation5 + $0x28] sm:$0xf]
    %v107 = vld [vmem:[#allocation5 + $0x2c] sm:$0xf]
    %v108 = vld [vmem:[#allocation5 + $0x30] sm:$0xf]
    %v109 = vld [vmem:[#allocation5 + $0x34] sm:$0xf]
    %v110 = vld [vmem:[#allocation5 + $0x38] sm:$0xf]
    %v111 = vld [vmem:[#allocation5 + $0x3c] sm:$0xf]
    %v128 = vunpack.c.l.b16 %v80
    %v129 = vunpack.c.l.b16 %v81
    %v130 = vunpack.c.l.b16 %v82
    %v131 = vunpack.c.l.b16 %v83
    %v132 = vunpack.c.l.b16 %v84
    %v133 = vunpack.c.l.b16 %v85
    %v134 = vunpack.c.l.b16 %v86
    %v135 = vunpack.c.l.b16 %v87
    %v136 = vunpack.c.l.b16 %v88
    %v137 = vunpack.c.l.b16 %v89
    %v138 = vunpack.c.l.b16 %v90
    %v139 = vunpack.c.l.b16 %v91
    %v140 = vunpack.c.l.b16 %v92
    %v141 = vunpack.c.l.b16 %v93
    %v142 = vunpack.c.l.b16 %v94
    %v143 = vunpack.c.l.b16 %v95
    %v144 = vpack.c.b16 %v129, %v128
    %v145 = vpack.c.b16 %v131, %v130
    %v146 = vpack.c.b16 %v133, %v132
    %v147 = vpack.c.b16 %v135, %v134
    %v148 = vpack.c.b16 %v137, %v136
    %v149 = vpack.c.b16 %v139, %v138
    %v150 = vpack.c.b16 %v141, %v140
    %v151 = vpack.c.b16 %v143, %v142
    %v176 = vunpack.c.l.b16 %v96
    %v177 = vunpack.c.l.b16 %v97
    %v178 = vunpack.c.l.b16 %v98
    %v179 = vunpack.c.l.b16 %v99
    %v180 = vunpack.c.l.b16 %v100
    %v181 = vunpack.c.l.b16 %v101
    %v182 = vunpack.c.l.b16 %v102
    %v183 = vunpack.c.l.b16 %v103
    %v184 = vunpack.c.l.b16 %v104
    %v185 = vunpack.c.l.b16 %v105
    %v186 = vunpack.c.l.b16 %v106
    %v187 = vunpack.c.l.b16 %v107
    %v188 = vunpack.c.l.b16 %v108
    %v189 = vunpack.c.l.b16 %v109
    %v190 = vunpack.c.l.b16 %v110
    %v191 = vunpack.c.l.b16 %v111
    %v192 = vpack.c.b16 %v177, %v176
    %v193 = vpack.c.b16 %v179, %v178
    %v194 = vpack.c.b16 %v181, %v180
    %v195 = vpack.c.b16 %v183, %v182
    %v196 = vpack.c.b16 %v185, %v184
    %v197 = vpack.c.b16 %v187, %v186
    %v198 = vpack.c.b16 %v189, %v188
    %v199 = vpack.c.b16 %v191, %v190
    %208 = vmatprep.subr.bf16.mxu0 0
    %209 = vmatpush1.bf16.msra.mxu0 %v192
    %210 = vmatprep.subr.bf16.mxu0 0
    %211 = vmatpush1.bf16.msra.mxu0 %v193
    %212 = vmatprep.subr.bf16.mxu0 0
    %213 = vmatpush1.bf16.msra.mxu0 %v194
    %214 = vmatprep.subr.bf16.mxu0 0
    %215 = vmatpush1.bf16.msra.mxu0 %v195
    %216 = vmatprep.subr.bf16.mxu0 0
    %217 = vmatpush1.bf16.msra.mxu0 %v196
    %218 = vmatprep.subr.bf16.mxu0 0
    %219 = vmatpush1.bf16.msra.mxu0 %v197
    %220 = vmatprep.subr.bf16.mxu0 0
    %221 = vmatpush1.bf16.msra.mxu0 %v198
    %222 = vmatprep.subr.bf16.mxu0 0
    %223 = vmatpush1.bf16.msra.mxu0 %v199
    %224 = vmatprep.subr.bf16.mxu0 0
    %225 = vmatpush1.bf16.msra.mxu0 0
    %226 = vmatprep.subr.bf16.mxu0 0
    %227 = vmatpush1.bf16.msra.mxu0 0
    %228 = vmatprep.subr.bf16.mxu0 0
    %229 = vmatpush1.bf16.msra.mxu0 0
    %230 = vmatprep.subr.bf16.mxu0 0
    %231 = vmatpush1.bf16.msra.mxu0 0
    %232 = vmatprep.subr.bf16.mxu0 0
    %233 = vmatpush1.bf16.msra.mxu0 0
    %234 = vmatprep.subr.bf16.mxu0 0
    %235 = vmatpush1.bf16.msra.mxu0 0
    %236 = vmatprep.subr.bf16.mxu0 0
    %237 = vmatpush1.bf16.msra.mxu0 0
    %238 = vmatprep.subr.bf16.mxu0 0
    %239 = vmatpush1.bf16.msra.mxu0 0
    %240 = vmatprep.mubr.bf16.mxu0 0
    %241 = vmatmul.mubr.bf16.gmra.mrb[0].mxu0 %v144
    %v242 = vpop.f32.mrb[0].mxu0
    %v243 = vadd.f32 0.0, %v242
    %v244 = vpop.f32.mrb[0].mxu0
    %v245 = vpop.f32.mrb[0].mxu0
    %v246 = vadd.f32 0.0, %v245
    %v247 = vpop.f32.mrb[0].mxu0
    %248 = vmatprep.mubr.bf16.mxu0 0
    %249 = vmatmul.mubr.bf16.gmra.mrb[0].mxu0 %v145
    %v250 = vpop.f32.mrb[0].mxu0
    %v251 = vadd.f32 0.0, %v250
    %v252 = vpop.f32.mrb[0].mxu0
    %v253 = vpop.f32.mrb[0].mxu0
    %v254 = vadd.f32 0.0, %v253
    %v255 = vpop.f32.mrb[0].mxu0
    %256 = vmatprep.mubr.bf16.mxu0 0
    %257 = vmatmul.mubr.bf16.gmra.mrb[0].mxu0 %v146
    %v258 = vpop.f32.mrb[0].mxu0
    %v259 = vadd.f32 0.0, %v258
    %v260 = vpop.f32.mrb[0].mxu0
    %v261 = vpop.f32.mrb[0].mxu0
    %v262 = vadd.f32 0.0, %v261
    %v263 = vpop.f32.mrb[0].mxu0
    %264 = vmatprep.mubr.bf16.mxu0 0
    %265 = vmatmul.mubr.bf16.gmra.mrb[0].mxu0 %v147
    %v266 = vpop.f32.mrb[0].mxu0
    %v267 = vadd.f32 0.0, %v266
    %v268 = vpop.f32.mrb[0].mxu0
    %v269 = vpop.f32.mrb[0].mxu0
    %v270 = vadd.f32 0.0, %v269
    %v271 = vpop.f32.mrb[0].mxu0
    %272 = vmatprep.mubr.bf16.mxu0 0
    %273 = vmatmul.mubr.bf16.gmra.mrb[0].mxu0 %v148
    %v274 = vpop.f32.mrb[0].mxu0
    %v275 = vadd.f32 0.0, %v274
    %v276 = vpop.f32.mrb[0].mxu0
    %v277 = vpop.f32.mrb[0].mxu0
    %v278 = vadd.f32 0.0, %v277
    %v279 = vpop.f32.mrb[0].mxu0
    %280 = vmatprep.mubr.bf16.mxu0 0
    %281 = vmatmul.mubr.bf16.gmra.mrb[0].mxu0 %v149
    %v282 = vpop.f32.mrb[0].mxu0
    %v283 = vadd.f32 0.0, %v282
    %v284 = vpop.f32.mrb[0].mxu0
    %v285 = vpop.f32.mrb[0].mxu0
    %v286 = vadd.f32 0.0, %v285
    %v287 = vpop.f32.mrb[0].mxu0
    %288 = vmatprep.mubr.bf16.mxu0 0
    %289 = vmatmul.mubr.bf16.gmra.mrb[0].mxu0 %v150
    %v290 = vpop.f32.mrb[0].mxu0
    %v291 = vadd.f32 0.0, %v290
    %v292 = vpop.f32.mrb[0].mxu0
    %v293 = vpop.f32.mrb[0].mxu0
    %v294 = vadd.f32 0.0, %v293
    %v295 = vpop.f32.mrb[0].mxu0
    %296 = vmatprep.mubr.bf16.mxu0 0
    %297 = vmatmul.mubr.bf16.gmra.mrb[0].mxu0 %v151
    %v298 = vpop.f32.mrb[0].mxu0
    %v299 = vadd.f32 0.0, %v298
    %v300 = vpop.f32.mrb[0].mxu0
    %v301 = vpop.f32.mrb[0].mxu0
    %v302 = vadd.f32 0.0, %v301
    %v303 = vpop.f32.mrb[0].mxu0
    %304 = vdwg.mxu0
    %v305 = vpack.c.bf16 %v246, %v243
    %v306 = vpack.c.bf16 %v254, %v251
    %v307 = vpack.c.bf16 %v262, %v259
    %v308 = vpack.c.bf16 %v270, %v267
    %v309 = vpack.c.bf16 %v278, %v275
    %v310 = vpack.c.bf16 %v286, %v283
    %v311 = vpack.c.bf16 %v294, %v291
    %v312 = vpack.c.bf16 %v302, %v299
    %v313 = vld [vmem:[#allocation7] sm:$0xf]
    %v314 = vld [vmem:[#allocation7 + $0x4] sm:$0xf]
    %v315 = vld [vmem:[#allocation7 + $0x8] sm:$0xf]
    %v316 = vld [vmem:[#allocation7 + $0xc] sm:$0xf]
    %v317 = vld [vmem:[#allocation7 + $0x10] sm:$0xf]
    %v318 = vld [vmem:[#allocation7 + $0x14] sm:$0xf]
    %v319 = vld [vmem:[#allocation7 + $0x18] sm:$0xf]
    %v320 = vld [vmem:[#allocation7 + $0x1c] sm:$0xf]
    %v321 = vld [vmem:[#allocation7 + $0x20] sm:$0xf]
    %v322 = vld [vmem:[#allocation7 + $0x24] sm:$0xf]
    %v323 = vld [vmem:[#allocation7 + $0x28] sm:$0xf]
    %v324 = vld [vmem:[#allocation7 + $0x2c] sm:$0xf]
    %v325 = vld [vmem:[#allocation7 + $0x30] sm:$0xf]
    %v326 = vld [vmem:[#allocation7 + $0x34] sm:$0xf]
    %v327 = vld [vmem:[#allocation7 + $0x38] sm:$0xf]
    %v328 = vld [vmem:[#allocation7 + $0x3c] sm:$0xf]
    %v329 = vld [vmem:[%s3] sm:$0x1]
    %v331 = vlaneseq
    %v332 = vshrl.u32 %v331, 7
    %v333 = vsub.s32 0, %v332
    %v334 = vrot.slane %v329, %v333
    %v352 = vunpack.c.l.b16 %v313
    %v353 = vunpack.c.l.b16 %v314
    %v354 = vunpack.c.l.b16 %v315
    %v355 = vunpack.c.l.b16 %v316
    %v356 = vunpack.c.l.b16 %v317
    %v357 = vunpack.c.l.b16 %v318
    %v358 = vunpack.c.l.b16 %v319
    %v359 = vunpack.c.l.b16 %v320
    %v360 = vunpack.c.l.b16 %v321
    %v361 = vunpack.c.l.b16 %v322
    %v362 = vunpack.c.l.b16 %v323
    %v363 = vunpack.c.l.b16 %v324
    %v364 = vunpack.c.l.b16 %v325
    %v365 = vunpack.c.l.b16 %v326
    %v366 = vunpack.c.l.b16 %v327
    %v367 = vunpack.c.l.b16 %v328
    %v368 = vpack.c.b16 %v353, %v352
    %v369 = vpack.c.b16 %v355, %v354
    %v370 = vpack.c.b16 %v357, %v356
    %v371 = vpack.c.b16 %v359, %v358
    %v372 = vpack.c.b16 %v361, %v360
    %v373 = vpack.c.b16 %v363, %v362
    %v374 = vpack.c.b16 %v365, %v364
    %v375 = vpack.c.b16 %v367, %v366
    %384 = vmatprep.subr.bf16.mxu0 0
    %385 = vmatpush1.bf16.msra.mxu0 %v368
    %386 = vmatprep.subr.bf16.mxu0 0
    %387 = vmatpush1.bf16.msra.mxu0 %v369
    %388 = vmatprep.subr.bf16.mxu0 0
    %389 = vmatpush1.bf16.msra.mxu0 %v370
    %390 = vmatprep.subr.bf16.mxu0 0
    %391 = vmatpush1.bf16.msra.mxu0 %v371
    %392 = vmatprep.subr.bf16.mxu0 0
    %393 = vmatpush1.bf16.msra.mxu0 %v372
    %394 = vmatprep.subr.bf16.mxu0 0
    %395 = vmatpush1.bf16.msra.mxu0 %v373
    %396 = vmatprep.subr.bf16.mxu0 0
    %397 = vmatpush1.bf16.msra.mxu0 %v374
    %398 = vmatprep.subr.bf16.mxu0 0
    %399 = vmatpush1.bf16.msra.mxu0 %v375
    %400 = vmatprep.subr.bf16.mxu0 0
    %401 = vmatpush1.bf16.msra.mxu0 0
    %402 = vmatprep.subr.bf16.mxu0 0
    %403 = vmatpush1.bf16.msra.mxu0 0
    %404 = vmatprep.subr.bf16.mxu0 0
    %405 = vmatpush1.bf16.msra.mxu0 0
    %406 = vmatprep.subr.bf16.mxu0 0
    %407 = vmatpush1.bf16.msra.mxu0 0
    %408 = vmatprep.subr.bf16.mxu0 0
    %409 = vmatpush1.bf16.msra.mxu0 0
    %410 = vmatprep.subr.bf16.mxu0 0
    %411 = vmatpush1.bf16.msra.mxu0 0
    %412 = vmatprep.subr.bf16.mxu0 0
    %413 = vmatpush1.bf16.msra.mxu0 0
    %414 = vmatprep.subr.bf16.mxu0 0
    %415 = vmatpush1.bf16.msra.mxu0 0
    %416 = vmatprep.mubr.bf16.mxu0 0
    %417 = vmatmul.mubr.bf16.gmra.mrb[0].mxu0 %v305
    %v418 = vpop.f32.mrb[0].mxu0
    %v419 = vadd.f32 %v334, %v418
    %v420 = vpop.f32.mrb[0].mxu0
    %v421 = vpop.f32.mrb[0].mxu0
    %v422 = vadd.f32 %v334, %v421
    %v423 = vpop.f32.mrb[0].mxu0
    %424 = vmatprep.mubr.bf16.mxu0 0
    %425 = vmatmul.mubr.bf16.gmra.mrb[0].mxu0 %v306
    %v426 = vpop.f32.mrb[0].mxu0
    %v427 = vadd.f32 %v334, %v426
    %v428 = vpop.f32.mrb[0].mxu0
    %v429 = vpop.f32.mrb[0].mxu0
    %v430 = vadd.f32 %v334, %v429
    %v431 = vpop.f32.mrb[0].mxu0
    %432 = vmatprep.mubr.bf16.mxu0 0
    %433 = vmatmul.mubr.bf16.gmra.mrb[0].mxu0 %v307
    %v434 = vpop.f32.mrb[0].mxu0
    %v435 = vadd.f32 %v334, %v434
    %v436 = vpop.f32.mrb[0].mxu0
    %v437 = vpop.f32.mrb[0].mxu0
    %v438 = vadd.f32 %v334, %v437
    %v439 = vpop.f32.mrb[0].mxu0
    %440 = vmatprep.mubr.bf16.mxu0 0
    %441 = vmatmul.mubr.bf16.gmra.mrb[0].mxu0 %v308
    %v442 = vpop.f32.mrb[0].mxu0
    %v443 = vadd.f32 %v334, %v442
    %v444 = vpop.f32.mrb[0].mxu0
    %v445 = vpop.f32.mrb[0].mxu0
    %v446 = vadd.f32 %v334, %v445
    %v447 = vpop.f32.mrb[0].mxu0
    %448 = vmatprep.mubr.bf16.mxu0 0
    %449 = vmatmul.mubr.bf16.gmra.mrb[0].mxu0 %v309
    %v450 = vpop.f32.mrb[0].mxu0
    %v451 = vadd.f32 %v334, %v450
    %v452 = vpop.f32.mrb[0].mxu0
    %v453 = vpop.f32.mrb[0].mxu0
    %v454 = vadd.f32 %v334, %v453
    %v455 = vpop.f32.mrb[0].mxu0
    %456 = vmatprep.mubr.bf16.mxu0 0
    %457 = vmatmul.mubr.bf16.gmra.mrb[0].mxu0 %v310
    %v458 = vpop.f32.mrb[0].mxu0
    %v459 = vadd.f32 %v334, %v458
    %v460 = vpop.f32.mrb[0].mxu0
    %v461 = vpop.f32.mrb[0].mxu0
    %v462 = vadd.f32 %v334, %v461
    %v463 = vpop.f32.mrb[0].mxu0
    %464 = vmatprep.mubr.bf16.mxu0 0
    %465 = vmatmul.mubr.bf16.gmra.mrb[0].mxu0 %v311
    %v466 = vpop.f32.mrb[0].mxu0
    %v467 = vadd.f32 %v334, %v466
    %v468 = vpop.f32.mrb[0].mxu0
    %v469 = vpop.f32.mrb[0].mxu0
    %v470 = vadd.f32 %v334, %v469
    %v471 = vpop.f32.mrb[0].mxu0
    %472 = vmatprep.mubr.bf16.mxu0 0
    %473 = vmatmul.mubr.bf16.gmra.mrb[0].mxu0 %v312
    %v474 = vpop.f32.mrb[0].mxu0
    %v475 = vadd.f32 %v334, %v474
    %v476 = vpop.f32.mrb[0].mxu0
    %v477 = vpop.f32.mrb[0].mxu0
    %v478 = vadd.f32 %v334, %v477
    %v479 = vpop.f32.mrb[0].mxu0
    %480 = vdwg.mxu0
    %v481 = vmax.f32 %v419, 0.0
    %v482 = vmax.f32 %v422, 0.0
    %v483 = vmax.f32 %v427, 0.0
    %v484 = vmax.f32 %v430, 0.0
    %v485 = vmax.f32 %v435, 0.0
    %v486 = vmax.f32 %v438, 0.0
    %v487 = vmax.f32 %v443, 0.0
    %v488 = vmax.f32 %v446, 0.0
    %v489 = vmax.f32 %v451, 0.0
    %v490 = vmax.f32 %v454, 0.0
    %v491 = vmax.f32 %v459, 0.0
    %v492 = vmax.f32 %v462, 0.0
    %v493 = vmax.f32 %v467, 0.0
    %v494 = vmax.f32 %v470, 0.0
    %v495 = vmax.f32 %v475, 0.0
    %v496 = vmax.f32 %v478, 0.0
    %v497 = vpack.c.bf16 %v482, %v481
    %v498 = vpack.c.bf16 %v484, %v483
    %v499 = vpack.c.bf16 %v486, %v485
    %v500 = vpack.c.bf16 %v488, %v487
    %v501 = vpack.c.bf16 %v490, %v489
    %v502 = vpack.c.bf16 %v492, %v491
    %v503 = vpack.c.bf16 %v494, %v493
    %v504 = vpack.c.bf16 %v496, %v495
    %v505 = vld [vmem:[#allocation8] sm:$0xf]
    %v506 = vld [vmem:[#allocation8 + $0x4] sm:$0xf]
    %v507 = vld [vmem:[#allocation8 + $0x8] sm:$0xf]
    %v508 = vld [vmem:[#allocation8 + $0xc] sm:$0xf]
    %v509 = vld [vmem:[#allocation8 + $0x10] sm:$0xf]
    %v510 = vld [vmem:[#allocation8 + $0x14] sm:$0xf]
    %v511 = vld [vmem:[#allocation8 + $0x18] sm:$0xf]
    %v512 = vld [vmem:[#allocation8 + $0x1c] sm:$0xf]
    %v513 = vld [vmem:[#allocation8 + $0x20] sm:$0xf]
    %v514 = vld [vmem:[#allocation8 + $0x24] sm:$0xf]
    %v515 = vld [vmem:[#allocation8 + $0x28] sm:$0xf]
    %v516 = vld [vmem:[#allocation8 + $0x2c] sm:$0xf]
    %v517 = vld [vmem:[#allocation8 + $0x30] sm:$0xf]
    %v518 = vld [vmem:[#allocation8 + $0x34] sm:$0xf]
    %v519 = vld [vmem:[#allocation8 + $0x38] sm:$0xf]
    %v520 = vld [vmem:[#allocation8 + $0x3c] sm:$0xf]
    %v521 = vld [vmem:[%s5] sm:$0x1]
    %v523 = vlaneseq
    %v524 = vshrl.u32 %v523, 7
    %v525 = vsub.s32 0, %v524
    %v526 = vrot.slane %v521, %v525
    %v544 = vunpack.c.l.b16 %v505
    %v545 = vunpack.c.l.b16 %v506
    %v546 = vunpack.c.l.b16 %v507
    %v547 = vunpack.c.l.b16 %v508
    %v548 = vunpack.c.l.b16 %v509
    %v549 = vunpack.c.l.b16 %v510
    %v550 = vunpack.c.l.b16 %v511
    %v551 = vunpack.c.l.b16 %v512
    %v552 = vunpack.c.l.b16 %v513
    %v553 = vunpack.c.l.b16 %v514
    %v554 = vunpack.c.l.b16 %v515
    %v555 = vunpack.c.l.b16 %v516
    %v556 = vunpack.c.l.b16 %v517
    %v557 = vunpack.c.l.b16 %v518
    %v558 = vunpack.c.l.b16 %v519
    %v559 = vunpack.c.l.b16 %v520
    %v560 = vpack.c.b16 %v545, %v544
    %v561 = vpack.c.b16 %v547, %v546
    %v562 = vpack.c.b16 %v549, %v548
    %v563 = vpack.c.b16 %v551, %v550
    %v564 = vpack.c.b16 %v553, %v552
    %v565 = vpack.c.b16 %v555, %v554
    %v566 = vpack.c.b16 %v557, %v556
    %v567 = vpack.c.b16 %v559, %v558
    %576 = vmatprep.subr.bf16.mxu0 0
    %577 = vmatpush1.bf16.msra.mxu0 %v560
    %578 = vmatprep.subr.bf16.mxu0 0
    %579 = vmatpush1.bf16.msra.mxu0 %v561
    %580 = vmatprep.subr.bf16.mxu0 0
    %581 = vmatpush1.bf16.msra.mxu0 %v562
    %582 = vmatprep.subr.bf16.mxu0 0
    %583 = vmatpush1.bf16.msra.mxu0 %v563
    %584 = vmatprep.subr.bf16.mxu0 0
    %585 = vmatpush1.bf16.msra.mxu0 %v564
    %586 = vmatprep.subr.bf16.mxu0 0
    %587 = vmatpush1.bf16.msra.mxu0 %v565
    %588 = vmatprep.subr.bf16.mxu0 0
    %589 = vmatpush1.bf16.msra.mxu0 %v566
    %590 = vmatprep.subr.bf16.mxu0 0
    %591 = vmatpush1.bf16.msra.mxu0 %v567
    %592 = vmatprep.subr.bf16.mxu0 0
    %593 = vmatpush1.bf16.msra.mxu0 0
    %594 = vmatprep.subr.bf16.mxu0 0
    %595 = vmatpush1.bf16.msra.mxu0 0
    %596 = vmatprep.subr.bf16.mxu0 0
    %597 = vmatpush1.bf16.msra.mxu0 0
    %598 = vmatprep.subr.bf16.mxu0 0
    %599 = vmatpush1.bf16.msra.mxu0 0
    %600 = vmatprep.subr.bf16.mxu0 0
    %601 = vmatpush1.bf16.msra.mxu0 0
    %602 = vmatprep.subr.bf16.mxu0 0
    %603 = vmatpush1.bf16.msra.mxu0 0
    %604 = vmatprep.subr.bf16.mxu0 0
    %605 = vmatpush1.bf16.msra.mxu0 0
    %606 = vmatprep.subr.bf16.mxu0 0
    %607 = vmatpush1.bf16.msra.mxu0 0
    %608 = vmatprep.mubr.bf16.mxu0 0
    %609 = vmatmul.mubr.bf16.gmra.mrb[0].mxu0 %v497
    %v610 = vpop.f32.mrb[0].mxu0
    %v611 = vadd.f32 %v526, %v610
    %v612 = vpop.f32.mrb[0].mxu0
    %v613 = vpop.f32.mrb[0].mxu0
    %v614 = vadd.f32 %v526, %v613
    %v615 = vpop.f32.mrb[0].mxu0
    %616 = vmatprep.mubr.bf16.mxu0 0
    %617 = vmatmul.mubr.bf16.gmra.mrb[0].mxu0 %v498
    %v618 = vpop.f32.mrb[0].mxu0
    %v619 = vadd.f32 %v526, %v618
    %v620 = vpop.f32.mrb[0].mxu0
    %v621 = vpop.f32.mrb[0].mxu0
    %v622 = vadd.f32 %v526, %v621
    %v623 = vpop.f32.mrb[0].mxu0
    %624 = vmatprep.mubr.bf16.mxu0 0
    %625 = vmatmul.mubr.bf16.gmra.mrb[0].mxu0 %v499
    %v626 = vpop.f32.mrb[0].mxu0
    %v627 = vadd.f32 %v526, %v626
    %v628 = vpop.f32.mrb[0].mxu0
    %v629 = vpop.f32.mrb[0].mxu0
    %v630 = vadd.f32 %v526, %v629
    %v631 = vpop.f32.mrb[0].mxu0
    %632 = vmatprep.mubr.bf16.mxu0 0
    %633 = vmatmul.mubr.bf16.gmra.mrb[0].mxu0 %v500
    %v634 = vpop.f32.mrb[0].mxu0
    %v635 = vadd.f32 %v526, %v634
    %v636 = vpop.f32.mrb[0].mxu0
    %v637 = vpop.f32.mrb[0].mxu0
    %v638 = vadd.f32 %v526, %v637
    %v639 = vpop.f32.mrb[0].mxu0
    %640 = vmatprep.mubr.bf16.mxu0 0
    %641 = vmatmul.mubr.bf16.gmra.mrb[0].mxu0 %v501
    %v642 = vpop.f32.mrb[0].mxu0
    %v643 = vadd.f32 %v526, %v642
    %v644 = vpop.f32.mrb[0].mxu0
    %v645 = vpop.f32.mrb[0].mxu0
    %v646 = vadd.f32 %v526, %v645
    %v647 = vpop.f32.mrb[0].mxu0
    %648 = vmatprep.mubr.bf16.mxu0 0
    %649 = vmatmul.mubr.bf16.gmra.mrb[0].mxu0 %v502
    %v650 = vpop.f32.mrb[0].mxu0
    %v651 = vadd.f32 %v526, %v650
    %v652 = vpop.f32.mrb[0].mxu0
    %v653 = vpop.f32.mrb[0].mxu0
    %v654 = vadd.f32 %v526, %v653
    %v655 = vpop.f32.mrb[0].mxu0
    %656 = vmatprep.mubr.bf16.mxu0 0
    %657 = vmatmul.mubr.bf16.gmra.mrb[0].mxu0 %v503
    %v658 = vpop.f32.mrb[0].mxu0
    %v659 = vadd.f32 %v526, %v658
    %v660 = vpop.f32.mrb[0].mxu0
    %v661 = vpop.f32.mrb[0].mxu0
    %v662 = vadd.f32 %v526, %v661
    %v663 = vpop.f32.mrb[0].mxu0
    %664 = vmatprep.mubr.bf16.mxu0 0
    %665 = vmatmul.mubr.bf16.gmra.mrb[0].mxu0 %v504
    %v666 = vpop.f32.mrb[0].mxu0
    %v667 = vadd.f32 %v526, %v666
    %v668 = vpop.f32.mrb[0].mxu0
    %v669 = vpop.f32.mrb[0].mxu0
    %v670 = vadd.f32 %v526, %v669
    %v671 = vpop.f32.mrb[0].mxu0
    %672 = vdwg.mxu0
    %v673 = vmax.f32 %v611, 0.0
    %v674 = vmax.f32 %v614, 0.0
    %v675 = vmax.f32 %v619, 0.0
    %v676 = vmax.f32 %v622, 0.0
    %v677 = vmax.f32 %v627, 0.0
    %v678 = vmax.f32 %v630, 0.0
    %v679 = vmax.f32 %v635, 0.0
    %v680 = vmax.f32 %v638, 0.0
    %v681 = vmax.f32 %v643, 0.0
    %v682 = vmax.f32 %v646, 0.0
    %v683 = vmax.f32 %v651, 0.0
    %v684 = vmax.f32 %v654, 0.0
    %v685 = vmax.f32 %v659, 0.0
    %v686 = vmax.f32 %v662, 0.0
    %v687 = vmax.f32 %v667, 0.0
    %v688 = vmax.f32 %v670, 0.0
    %v689 = vpack.c.bf16 %v674, %v673
    %v690 = vpack.c.bf16 %v676, %v675
    %v691 = vpack.c.bf16 %v678, %v677
    %v692 = vpack.c.bf16 %v680, %v679
    %v693 = vpack.c.bf16 %v682, %v681
    %v694 = vpack.c.bf16 %v684, %v683
    %v695 = vpack.c.bf16 %v686, %v685
    %v696 = vpack.c.bf16 %v688, %v687
    %697 = vmatprep.subr.bf16.mxu0 0
    %698 = vmatpush1.bf16.msra.mxu0 %v689
    %699 = vmatprep.subr.bf16.mxu0 0
    %700 = vmatpush1.bf16.msra.mxu0 %v690
    %701 = vmatprep.subr.bf16.mxu0 0
    %702 = vmatpush1.bf16.msra.mxu0 %v691
    %703 = vmatprep.subr.bf16.mxu0 0
    %704 = vmatpush1.bf16.msra.mxu0 %v692
    %705 = vmatprep.subr.bf16.mxu0 0
    %706 = vmatpush1.bf16.msra.mxu0 %v693
    %707 = vmatprep.subr.bf16.mxu0 0
    %708 = vmatpush1.bf16.msra.mxu0 %v694
    %709 = vmatprep.subr.bf16.mxu0 0
    %710 = vmatpush1.bf16.msra.mxu0 %v695
    %711 = vmatprep.subr.bf16.mxu0 0
    %712 = vmatpush1.bf16.msra.mxu0 %v696
    %713 = vmatprep.subr.bf16.mxu0 0
    %714 = vmatpush1.bf16.msra.mxu0 0
    %715 = vmatprep.subr.bf16.mxu0 0
    %716 = vmatpush1.bf16.msra.mxu0 0
    %717 = vmatprep.subr.bf16.mxu0 0
    %718 = vmatpush1.bf16.msra.mxu0 0
    %719 = vmatprep.subr.bf16.mxu0 0
    %720 = vmatpush1.bf16.msra.mxu0 0
    %721 = vmatprep.subr.bf16.mxu0 0
    %722 = vmatpush1.bf16.msra.mxu0 0
    %723 = vmatprep.subr.bf16.mxu0 0
    %724 = vmatpush1.bf16.msra.mxu0 0
    %725 = vmatprep.subr.bf16.mxu0 0
    %726 = vmatpush1.bf16.msra.mxu0 0
    %727 = vmatprep.subr.bf16.mxu0 0
    %728 = vmatpush1.bf16.msra.mxu0 0
    %729 = vmatprep.mubr.bf16.mxu0 0
    %730 = vmatmul.mubr.bf16.gmra.mrb[0].mxu0 %v144
    %v731 = vpop.f32.mrb[0].mxu0
    %v732 = vadd.f32 0.0, %v731
    %v733 = vpop.f32.mrb[0].mxu0
    %v734 = vpop.f32.mrb[0].mxu0
    %v735 = vadd.f32 0.0, %v734
    %v736 = vpop.f32.mrb[0].mxu0
    %737 = vmatprep.mubr.bf16.mxu0 0
    %738 = vmatmul.mubr.bf16.gmra.mrb[0].mxu0 %v145
    %v739 = vpop.f32.mrb[0].mxu0
    %v740 = vadd.f32 0.0, %v739
    %v741 = vpop.f32.mrb[0].mxu0
    %v742 = vpop.f32.mrb[0].mxu0
    %v743 = vadd.f32 0.0, %v742
    %v744 = vpop.f32.mrb[0].mxu0
    %745 = vmatprep.mubr.bf16.mxu0 0
    %746 = vmatmul.mubr.bf16.gmra.mrb[0].mxu0 %v146
    %v747 = vpop.f32.mrb[0].mxu0
    %v748 = vadd.f32 0.0, %v747
    %v749 = vpop.f32.mrb[0].mxu0
    %v750 = vpop.f32.mrb[0].mxu0
    %v751 = vadd.f32 0.0, %v750
    %v752 = vpop.f32.mrb[0].mxu0
    %753 = vmatprep.mubr.bf16.mxu0 0
    %754 = vmatmul.mubr.bf16.gmra.mrb[0].mxu0 %v147
    %v755 = vpop.f32.mrb[0].mxu0
    %v756 = vadd.f32 0.0, %v755
    %v757 = vpop.f32.mrb[0].mxu0
    %v758 = vpop.f32.mrb[0].mxu0
    %v759 = vadd.f32 0.0, %v758
    %v760 = vpop.f32.mrb[0].mxu0
    %761 = vmatprep.mubr.bf16.mxu0 0
    %762 = vmatmul.mubr.bf16.gmra.mrb[0].mxu0 %v148
    %v763 = vpop.f32.mrb[0].mxu0
    %v764 = vadd.f32 0.0, %v763
    %v765 = vpop.f32.mrb[0].mxu0
    %v766 = vpop.f32.mrb[0].mxu0
    %v767 = vadd.f32 0.0, %v766
    %v768 = vpop.f32.mrb[0].mxu0
    %769 = vmatprep.mubr.bf16.mxu0 0
    %770 = vmatmul.mubr.bf16.gmra.mrb[0].mxu0 %v149
    %v771 = vpop.f32.mrb[0].mxu0
    %v772 = vadd.f32 0.0, %v771
    %v773 = vpop.f32.mrb[0].mxu0
    %v774 = vpop.f32.mrb[0].mxu0
    %v775 = vadd.f32 0.0, %v774
    %v776 = vpop.f32.mrb[0].mxu0
    %777 = vmatprep.mubr.bf16.mxu0 0
    %778 = vmatmul.mubr.bf16.gmra.mrb[0].mxu0 %v150
    %v779 = vpop.f32.mrb[0].mxu0
    %v780 = vadd.f32 0.0, %v779
    %v781 = vpop.f32.mrb[0].mxu0
    %v782 = vpop.f32.mrb[0].mxu0
    %v783 = vadd.f32 0.0, %v782
    %v784 = vpop.f32.mrb[0].mxu0
    %785 = vmatprep.mubr.bf16.mxu0 0
    %786 = vmatmul.mubr.bf16.gmra.mrb[0].mxu0 %v151
    %v787 = vpop.f32.mrb[0].mxu0
    %v788 = vadd.f32 0.0, %v787
    %v789 = vpop.f32.mrb[0].mxu0
    %v790 = vpop.f32.mrb[0].mxu0
    %v791 = vadd.f32 0.0, %v790
    %v792 = vpop.f32.mrb[0].mxu0
    %793 = vdwg.mxu0
    %v794 = vpack.c.bf16 %v735, %v732
    %v795 = vpack.c.bf16 %v743, %v740
    %v796 = vpack.c.bf16 %v751, %v748
    %v797 = vpack.c.bf16 %v759, %v756
    %v798 = vpack.c.bf16 %v767, %v764
    %v799 = vpack.c.bf16 %v775, %v772
    %v800 = vpack.c.bf16 %v783, %v780
    %v801 = vpack.c.bf16 %v791, %v788
    %s802 = scalar_lea.vmem [#allocation7], 64
    %v803 = vld [vmem:[%s802] sm:$0xf]
    %v804 = vld [vmem:[%s802 + $0x4] sm:$0xf]
    %v805 = vld [vmem:[%s802 + $0x8] sm:$0xf]
    %v806 = vld [vmem:[%s802 + $0xc] sm:$0xf]
    %v807 = vld [vmem:[%s802 + $0x10] sm:$0xf]
    %v808 = vld [vmem:[%s802 + $0x14] sm:$0xf]
    %v809 = vld [vmem:[%s802 + $0x18] sm:$0xf]
    %v810 = vld [vmem:[%s802 + $0x1c] sm:$0xf]
    %v811 = vld [vmem:[%s802 + $0x20] sm:$0xf]
    %v812 = vld [vmem:[%s802 + $0x24] sm:$0xf]
    %v813 = vld [vmem:[%s802 + $0x28] sm:$0xf]
    %v814 = vld [vmem:[%s802 + $0x2c] sm:$0xf]
    %v815 = vld [vmem:[%s802 + $0x30] sm:$0xf]
    %v816 = vld [vmem:[%s802 + $0x34] sm:$0xf]
    %v817 = vld [vmem:[%s802 + $0x38] sm:$0xf]
    %v818 = vld [vmem:[%s802 + $0x3c] sm:$0xf]
    %s819 = scalar_lea.vmem %s3, 1
    %v820 = vld [vmem:[%s819] sm:$0x1]
    %v822 = vlaneseq
    %v823 = vshrl.u32 %v822, 7
    %v824 = vsub.s32 0, %v823
    %v825 = vrot.slane %v820, %v824
    %v843 = vunpack.c.l.b16 %v803
    %v844 = vunpack.c.l.b16 %v804
    %v845 = vunpack.c.l.b16 %v805
    %v846 = vunpack.c.l.b16 %v806
    %v847 = vunpack.c.l.b16 %v807
    %v848 = vunpack.c.l.b16 %v808
    %v849 = vunpack.c.l.b16 %v809
    %v850 = vunpack.c.l.b16 %v810
    %v851 = vunpack.c.l.b16 %v811
    %v852 = vunpack.c.l.b16 %v812
    %v853 = vunpack.c.l.b16 %v813
    %v854 = vunpack.c.l.b16 %v814
    %v855 = vunpack.c.l.b16 %v815
    %v856 = vunpack.c.l.b16 %v816
    %v857 = vunpack.c.l.b16 %v817
    %v858 = vunpack.c.l.b16 %v818
    %v859 = vpack.c.b16 %v844, %v843
    %v860 = vpack.c.b16 %v846, %v845
    %v861 = vpack.c.b16 %v848, %v847
    %v862 = vpack.c.b16 %v850, %v849
    %v863 = vpack.c.b16 %v852, %v851
    %v864 = vpack.c.b16 %v854, %v853
    %v865 = vpack.c.b16 %v856, %v855
    %v866 = vpack.c.b16 %v858, %v857
    %875 = vmatprep.subr.bf16.mxu0 0
    %876 = vmatpush1.bf16.msra.mxu0 %v859
    %877 = vmatprep.subr.bf16.mxu0 0
    %878 = vmatpush1.bf16.msra.mxu0 %v860
    %879 = vmatprep.subr.bf16.mxu0 0
    %880 = vmatpush1.bf16.msra.mxu0 %v861
    %881 = vmatprep.subr.bf16.mxu0 0
    %882 = vmatpush1.bf16.msra.mxu0 %v862
    %883 = vmatprep.subr.bf16.mxu0 0
    %884 = vmatpush1.bf16.msra.mxu0 %v863
    %885 = vmatprep.subr.bf16.mxu0 0
    %886 = vmatpush1.bf16.msra.mxu0 %v864
    %887 = vmatprep.subr.bf16.mxu0 0
    %888 = vmatpush1.bf16.msra.mxu0 %v865
    %889 = vmatprep.subr.bf16.mxu0 0
    %890 = vmatpush1.bf16.msra.mxu0 %v866
    %891 = vmatprep.subr.bf16.mxu0 0
    %892 = vmatpush1.bf16.msra.mxu0 0
    %893 = vmatprep.subr.bf16.mxu0 0
    %894 = vmatpush1.bf16.msra.mxu0 0
    %895 = vmatprep.subr.bf16.mxu0 0
    %896 = vmatpush1.bf16.msra.mxu0 0
    %897 = vmatprep.subr.bf16.mxu0 0
    %898 = vmatpush1.bf16.msra.mxu0 0
    %899 = vmatprep.subr.bf16.mxu0 0
    %900 = vmatpush1.bf16.msra.mxu0 0
    %901 = vmatprep.subr.bf16.mxu0 0
    %902 = vmatpush1.bf16.msra.mxu0 0
    %903 = vmatprep.subr.bf16.mxu0 0
    %904 = vmatpush1.bf16.msra.mxu0 0
    %905 = vmatprep.subr.bf16.mxu0 0
    %906 = vmatpush1.bf16.msra.mxu0 0
    %907 = vmatprep.mubr.bf16.mxu0 0
    %908 = vmatmul.mubr.bf16.gmra.mrb[0].mxu0 %v794
    %v909 = vpop.f32.mrb[0].mxu0
    %v910 = vadd.f32 %v825, %v909
    %v911 = vpop.f32.mrb[0].mxu0
    %v912 = vpop.f32.mrb[0].mxu0
    %v913 = vadd.f32 %v825, %v912
    %v914 = vpop.f32.mrb[0].mxu0
    %915 = vmatprep.mubr.bf16.mxu0 0
    %916 = vmatmul.mubr.bf16.gmra.mrb[0].mxu0 %v795
    %v917 = vpop.f32.mrb[0].mxu0
    %v918 = vadd.f32 %v825, %v917
    %v919 = vpop.f32.mrb[0].mxu0
    %v920 = vpop.f32.mrb[0].mxu0
    %v921 = vadd.f32 %v825, %v920
    %v922 = vpop.f32.mrb[0].mxu0
    %923 = vmatprep.mubr.bf16.mxu0 0
    %924 = vmatmul.mubr.bf16.gmra.mrb[0].mxu0 %v796
    %v925 = vpop.f32.mrb[0].mxu0
    %v926 = vadd.f32 %v825, %v925
    %v927 = vpop.f32.mrb[0].mxu0
    %v928 = vpop.f32.mrb[0].mxu0
    %v929 = vadd.f32 %v825, %v928
    %v930 = vpop.f32.mrb[0].mxu0
    %931 = vmatprep.mubr.bf16.mxu0 0
    %932 = vmatmul.mubr.bf16.gmra.mrb[0].mxu0 %v797
    %v933 = vpop.f32.mrb[0].mxu0
    %v934 = vadd.f32 %v825, %v933
    %v935 = vpop.f32.mrb[0].mxu0
    %v936 = vpop.f32.mrb[0].mxu0
    %v937 = vadd.f32 %v825, %v936
    %v938 = vpop.f32.mrb[0].mxu0
    %939 = vmatprep.mubr.bf16.mxu0 0
    %940 = vmatmul.mubr.bf16.gmra.mrb[0].mxu0 %v798
    %v941 = vpop.f32.mrb[0].mxu0
    %v942 = vadd.f32 %v825, %v941
    %v943 = vpop.f32.mrb[0].mxu0
    %v944 = vpop.f32.mrb[0].mxu0
    %v945 = vadd.f32 %v825, %v944
    %v946 = vpop.f32.mrb[0].mxu0
    %947 = vmatprep.mubr.bf16.mxu0 0
    %948 = vmatmul.mubr.bf16.gmra.mrb[0].mxu0 %v799
    %v949 = vpop.f32.mrb[0].mxu0
    %v950 = vadd.f32 %v825, %v949
    %v951 = vpop.f32.mrb[0].mxu0
    %v952 = vpop.f32.mrb[0].mxu0
    %v953 = vadd.f32 %v825, %v952
    %v954 = vpop.f32.mrb[0].mxu0
    %955 = vmatprep.mubr.bf16.mxu0 0
    %956 = vmatmul.mubr.bf16.gmra.mrb[0].mxu0 %v800
    %v957 = vpop.f32.mrb[0].mxu0
    %v958 = vadd.f32 %v825, %v957
    %v959 = vpop.f32.mrb[0].mxu0
    %v960 = vpop.f32.mrb[0].mxu0
    %v961 = vadd.f32 %v825, %v960
    %v962 = vpop.f32.mrb[0].mxu0
    %963 = vmatprep.mubr.bf16.mxu0 0
    %964 = vmatmul.mubr.bf16.gmra.mrb[0].mxu0 %v801
    %v965 = vpop.f32.mrb[0].mxu0
    %v966 = vadd.f32 %v825, %v965
    %v967 = vpop.f32.mrb[0].mxu0
    %v968 = vpop.f32.mrb[0].mxu0
    %v969 = vadd.f32 %v825, %v968
    %v970 = vpop.f32.mrb[0].mxu0
    %971 = vdwg.mxu0
    %v972 = vmax.f32 %v910, 0.0
    %v973 = vmax.f32 %v913, 0.0
    %v974 = vmax.f32 %v918, 0.0
    %v975 = vmax.f32 %v921, 0.0
    %v976 = vmax.f32 %v926, 0.0
    %v977 = vmax.f32 %v929, 0.0
    %v978 = vmax.f32 %v934, 0.0
    %v979 = vmax.f32 %v937, 0.0
    %v980 = vmax.f32 %v942, 0.0
    %v981 = vmax.f32 %v945, 0.0
    %v982 = vmax.f32 %v950, 0.0
    %v983 = vmax.f32 %v953, 0.0
    %v984 = vmax.f32 %v958, 0.0
    %v985 = vmax.f32 %v961, 0.0
    %v986 = vmax.f32 %v966, 0.0
    %v987 = vmax.f32 %v969, 0.0
    %v988 = vpack.c.bf16 %v973, %v972
    %v989 = vpack.c.bf16 %v975, %v974
    %v990 = vpack.c.bf16 %v977, %v976
    %v991 = vpack.c.bf16 %v979, %v978
    %v992 = vpack.c.bf16 %v981, %v980
    %v993 = vpack.c.bf16 %v983, %v982
    %v994 = vpack.c.bf16 %v985, %v984
    %v995 = vpack.c.bf16 %v987, %v986
    %s996 = scalar_lea.vmem [#allocation8], 64
    %v997 = vld [vmem:[%s996] sm:$0xf]
    %v998 = vld [vmem:[%s996 + $0x4] sm:$0xf]
    %v999 = vld [vmem:[%s996 + $0x8] sm:$0xf]
    %v1000 = vld [vmem:[%s996 + $0xc] sm:$0xf]
    %v1001 = vld [vmem:[%s996 + $0x10] sm:$0xf]
    %v1002 = vld [vmem:[%s996 + $0x14] sm:$0xf]
    %v1003 = vld [vmem:[%s996 + $0x18] sm:$0xf]
    %v1004 = vld [vmem:[%s996 + $0x1c] sm:$0xf]
    %v1005 = vld [vmem:[%s996 + $0x20] sm:$0xf]
    %v1006 = vld [vmem:[%s996 + $0x24] sm:$0xf]
    %v1007 = vld [vmem:[%s996 + $0x28] sm:$0xf]
    %v1008 = vld [vmem:[%s996 + $0x2c] sm:$0xf]
    %v1009 = vld [vmem:[%s996 + $0x30] sm:$0xf]
    %v1010 = vld [vmem:[%s996 + $0x34] sm:$0xf]
    %v1011 = vld [vmem:[%s996 + $0x38] sm:$0xf]
    %v1012 = vld [vmem:[%s996 + $0x3c] sm:$0xf]
    %s1013 = scalar_lea.vmem %s5, 1
    %v1014 = vld [vmem:[%s1013] sm:$0x1]
    %v1016 = vlaneseq
    %v1017 = vshrl.u32 %v1016, 7
    %v1018 = vsub.s32 0, %v1017
    %v1019 = vrot.slane %v1014, %v1018
    %v1037 = vunpack.c.l.b16 %v997
    %v1038 = vunpack.c.l.b16 %v998
    %v1039 = vunpack.c.l.b16 %v999
    %v1040 = vunpack.c.l.b16 %v1000
    %v1041 = vunpack.c.l.b16 %v1001
    %v1042 = vunpack.c.l.b16 %v1002
    %v1043 = vunpack.c.l.b16 %v1003
    %v1044 = vunpack.c.l.b16 %v1004
    %v1045 = vunpack.c.l.b16 %v1005
    %v1046 = vunpack.c.l.b16 %v1006
    %v1047 = vunpack.c.l.b16 %v1007
    %v1048 = vunpack.c.l.b16 %v1008
    %v1049 = vunpack.c.l.b16 %v1009
    %v1050 = vunpack.c.l.b16 %v1010
    %v1051 = vunpack.c.l.b16 %v1011
    %v1052 = vunpack.c.l.b16 %v1012
    %v1053 = vpack.c.b16 %v1038, %v1037
    %v1054 = vpack.c.b16 %v1040, %v1039
    %v1055 = vpack.c.b16 %v1042, %v1041
    %v1056 = vpack.c.b16 %v1044, %v1043
    %v1057 = vpack.c.b16 %v1046, %v1045
    %v1058 = vpack.c.b16 %v1048, %v1047
    %v1059 = vpack.c.b16 %v1050, %v1049
    %v1060 = vpack.c.b16 %v1052, %v1051
    %1069 = vmatprep.subr.bf16.mxu0 0
    %1070 = vmatpush1.bf16.msra.mxu0 %v1053
    %1071 = vmatprep.subr.bf16.mxu0 0
    %1072 = vmatpush1.bf16.msra.mxu0 %v1054
    %1073 = vmatprep.subr.bf16.mxu0 0
    %1074 = vmatpush1.bf16.msra.mxu0 %v1055
    %1075 = vmatprep.subr.bf16.mxu0 0
    %1076 = vmatpush1.bf16.msra.mxu0 %v1056
    %1077 = vmatprep.subr.bf16.mxu0 0
    %1078 = vmatpush1.bf16.msra.mxu0 %v1057
    %1079 = vmatprep.subr.bf16.mxu0 0
    %1080 = vmatpush1.bf16.msra.mxu0 %v1058
    %1081 = vmatprep.subr.bf16.mxu0 0
    %1082 = vmatpush1.bf16.msra.mxu0 %v1059
    %1083 = vmatprep.subr.bf16.mxu0 0
    %1084 = vmatpush1.bf16.msra.mxu0 %v1060
    %1085 = vmatprep.subr.bf16.mxu0 0
    %1086 = vmatpush1.bf16.msra.mxu0 0
    %1087 = vmatprep.subr.bf16.mxu0 0
    %1088 = vmatpush1.bf16.msra.mxu0 0
    %1089 = vmatprep.subr.bf16.mxu0 0
    %1090 = vmatpush1.bf16.msra.mxu0 0
    %1091 = vmatprep.subr.bf16.mxu0 0
    %1092 = vmatpush1.bf16.msra.mxu0 0
    %1093 = vmatprep.subr.bf16.mxu0 0
    %1094 = vmatpush1.bf16.msra.mxu0 0
    %1095 = vmatprep.subr.bf16.mxu0 0
    %1096 = vmatpush1.bf16.msra.mxu0 0
    %1097 = vmatprep.subr.bf16.mxu0 0
    %1098 = vmatpush1.bf16.msra.mxu0 0
    %1099 = vmatprep.subr.bf16.mxu0 0
    %1100 = vmatpush1.bf16.msra.mxu0 0
    %1101 = vmatprep.mubr.bf16.mxu0 0
    %1102 = vmatmul.mubr.bf16.gmra.mrb[0].mxu0 %v988
    %v1103 = vpop.f32.mrb[0].mxu0
    %v1104 = vadd.f32 %v1019, %v1103
    %v1105 = vpop.f32.mrb[0].mxu0
    %v1106 = vpop.f32.mrb[0].mxu0
    %v1107 = vadd.f32 %v1019, %v1106
    %v1108 = vpop.f32.mrb[0].mxu0
    %1109 = vmatprep.mubr.bf16.mxu0 0
    %1110 = vmatmul.mubr.bf16.gmra.mrb[0].mxu0 %v989
    %v1111 = vpop.f32.mrb[0].mxu0
    %v1112 = vadd.f32 %v1019, %v1111
    %v1113 = vpop.f32.mrb[0].mxu0
    %v1114 = vpop.f32.mrb[0].mxu0
    %v1115 = vadd.f32 %v1019, %v1114
    %v1116 = vpop.f32.mrb[0].mxu0
    %1117 = vmatprep.mubr.bf16.mxu0 0
    %1118 = vmatmul.mubr.bf16.gmra.mrb[0].mxu0 %v990
    %v1119 = vpop.f32.mrb[0].mxu0
    %v1120 = vadd.f32 %v1019, %v1119
    %v1121 = vpop.f32.mrb[0].mxu0
    %v1122 = vpop.f32.mrb[0].mxu0
    %v1123 = vadd.f32 %v1019, %v1122
    %v1124 = vpop.f32.mrb[0].mxu0
    %1125 = vmatprep.mubr.bf16.mxu0 0
    %1126 = vmatmul.mubr.bf16.gmra.mrb[0].mxu0 %v991
    %v1127 = vpop.f32.mrb[0].mxu0
    %v1128 = vadd.f32 %v1019, %v1127
    %v1129 = vpop.f32.mrb[0].mxu0
    %v1130 = vpop.f32.mrb[0].mxu0
    %v1131 = vadd.f32 %v1019, %v1130
    %v1132 = vpop.f32.mrb[0].mxu0
    %1133 = vmatprep.mubr.bf16.mxu0 0
    %1134 = vmatmul.mubr.bf16.gmra.mrb[0].mxu0 %v992
    %v1135 = vpop.f32.mrb[0].mxu0
    %v1136 = vadd.f32 %v1019, %v1135
    %v1137 = vpop.f32.mrb[0].mxu0
    %v1138 = vpop.f32.mrb[0].mxu0
    %v1139 = vadd.f32 %v1019, %v1138
    %v1140 = vpop.f32.mrb[0].mxu0
    %1141 = vmatprep.mubr.bf16.mxu0 0
    %1142 = vmatmul.mubr.bf16.gmra.mrb[0].mxu0 %v993
    %v1143 = vpop.f32.mrb[0].mxu0
    %v1144 = vadd.f32 %v1019, %v1143
    %v1145 = vpop.f32.mrb[0].mxu0
    %v1146 = vpop.f32.mrb[0].mxu0
    %v1147 = vadd.f32 %v1019, %v1146
    %v1148 = vpop.f32.mrb[0].mxu0
    %1149 = vmatprep.mubr.bf16.mxu0 0
    %1150 = vmatmul.mubr.bf16.gmra.mrb[0].mxu0 %v994
    %v1151 = vpop.f32.mrb[0].mxu0
    %v1152 = vadd.f32 %v1019, %v1151
    %v1153 = vpop.f32.mrb[0].mxu0
    %v1154 = vpop.f32.mrb[0].mxu0
    %v1155 = vadd.f32 %v1019, %v1154
    %v1156 = vpop.f32.mrb[0].mxu0
    %1157 = vmatprep.mubr.bf16.mxu0 0
    %1158 = vmatmul.mubr.bf16.gmra.mrb[0].mxu0 %v995
    %v1159 = vpop.f32.mrb[0].mxu0
    %v1160 = vadd.f32 %v1019, %v1159
    %v1161 = vpop.f32.mrb[0].mxu0
    %v1162 = vpop.f32.mrb[0].mxu0
    %v1163 = vadd.f32 %v1019, %v1162
    %v1164 = vpop.f32.mrb[0].mxu0
    %1165 = vdwg.mxu0
    %1166 = vst [vmem:[#allocation10] sm:$0xff] %v1104
    %1167 = vst [vmem:[#allocation10 + $0x8] sm:$0xff] %v1107
    %1168 = vst [vmem:[#allocation10 + $0x10] sm:$0xff] %v1112
    %1169 = vst [vmem:[#allocation10 + $0x18] sm:$0xff] %v1115
    %1170 = vst [vmem:[#allocation10 + $0x20] sm:$0xff] %v1120
    %1171 = vst [vmem:[#allocation10 + $0x28] sm:$0xff] %v1123
    %1172 = vst [vmem:[#allocation10 + $0x30] sm:$0xff] %v1128
    %1173 = vst [vmem:[#allocation10 + $0x38] sm:$0xff] %v1131
    %1174 = vst [vmem:[#allocation10 + $0x40] sm:$0xff] %v1136
    %1175 = vst [vmem:[#allocation10 + $0x48] sm:$0xff] %v1139
    %1176 = vst [vmem:[#allocation10 + $0x50] sm:$0xff] %v1144
    %1177 = vst [vmem:[#allocation10 + $0x58] sm:$0xff] %v1147
    %1178 = vst [vmem:[#allocation10 + $0x60] sm:$0xff] %v1152
    %1179 = vst [vmem:[#allocation10 + $0x68] sm:$0xff] %v1155
    %1180 = vst [vmem:[#allocation10 + $0x70] sm:$0xff] %v1160
    %1181 = vst [vmem:[#allocation10 + $0x78] sm:$0xff] %v1163
    // Predicated region
    $region42: #{tpu_custom_call.1} parent=1 // pred_check
      _
    $region43: #{tpu_custom_call.1} parent=1 // pred_check_branch
      %1183 = sbr.rel (0) target = $region45
    $region44: #{tpu_custom_call.1} parent=1 // pred_region
      %s1185 = ssub.s32 2048, 2048
      %1186 = vsyncadd [#allocation4], %s1185
      %s1187 = sshll.u32 [#allocation10], 4
      %s1188 = int_to_ptr.vmem [resolvable:$true] %s1187
      %1193 = dma.vmem_to_hbm [thread:$0]  %s1188, 2048, %s6, [#allocation4], 128, 128, 8
    $region45: #{tpu_custom_call.1} parent=1 // pred_fallthru
      _
    // Predicated region
    $region46: #{tpu_custom_call.1} parent=1 // pred_check
      _
    $region47: #{tpu_custom_call.1} parent=1 // pred_check_branch
      %1195 = sbr.rel (0) target = $region49
    $region48: #{tpu_custom_call.1} parent=1 // pred_region
      %1196 = dma.done [#allocation4], 2048
    $region49: #{tpu_custom_call.1} parent=1 // pred_fallthru
      _
    %1197 = vsyncpa [#allocation3], 1
    %1198 = vsyncpa [#allocation6], 1
    %1199 = vsyncpa [#allocation9], 1
    %1200 = vsyncpa [#allocation4], 1

</llo_original>
